<compile_context>
chip_gen: v7x
topology: tpu7x:2x2x1
jax: 0.10.0
libtpu: 0.0.40
codegen_flags: <defaults>
</compile_context>

<pallas_src>
import jax
import jax.numpy as jnp
from jax import lax
from jax.experimental import pallas as pl
from jax.experimental.pallas import tpu as pltpu

KSIZE = 9
PAD = (KSIZE - 1) // 2


def _spatial_attn_kernel(bmat_ref, x_ref, o_ref):
    # bmat_ref: VMEM (KSIZE*2*W, W) f32 banded conv weights (kh, c, kw taps + W-padding folded in)
    # x_ref:    VMEM (Bt, C, H, W) input block
    # o_ref:    VMEM (Bt, 1, H, W) output block
    bt, C, H, W = x_ref.shape
    inv_c = jnp.float32(1.0 / C)
    band = bmat_ref[...]                                    # (KSIZE*2W, W), resident
    zrows = jnp.zeros((PAD, 2 * W), jnp.float32)            # hoisted (not re-broadcast per image)

    tap_rows = []
    for b in range(bt):                                     # static unroll (Bt kept small)
        # ---- fused single-pass channel mean + max (f32 accumulation) ----
        x0 = x_ref[b, 0].astype(jnp.float32)                # (H, W)
        s, mx = x0, x0
        for c in range(1, C):                               # static unroll over channels
            xc = x_ref[b, c].astype(jnp.float32)
            s = s + xc
            mx = jnp.maximum(mx, xc)
        avg = s * inv_c

        # ---- concat [mean | max] along lanes, zero-pad along H (sublanes) only ----
        cat = jnp.concatenate([avg, mx], axis=1)            # (H, 2W)
        cat_p = jnp.concatenate([zrows, cat, zrows], axis=0)  # (H + 2*PAD, 2W)

        # ---- lane-expanded 9-tap tile: all kh shifts side by side along lanes ----
        taps = jnp.concatenate(
            [cat_p[kh:kh + H, :] for kh in range(KSIZE)], axis=1)  # (H, KSIZE*2W)
        tap_rows.append(taps)

    # ---- one MXU matmul for the whole block: (Bt*H, 18W) x (18W, W) ----
    feat = jnp.concatenate(tap_rows, axis=0) if bt > 1 else tap_rows[0]
    acc = jnp.dot(feat, band, preferred_element_type=jnp.float32)   # (Bt*H, W)
    out = jax.nn.sigmoid(acc).astype(o_ref.dtype)

    for b in range(bt):                                     # H is static -> aligned slices
        o_ref[b, 0] = out[b * H:(b + 1) * H, :]


def _make_band_matrix(weight, w_dim):
    """bmat[kh*2W + c*W + j, w] = weight[0, c, kh, j - w + PAD] inside the 9-tap band, else 0.
    A right-matmul with bmat performs the (c, kh, kw) contraction and the SAME zero padding
    along W in one shot (H padding is done explicitly in the kernel)."""
    w = weight.reshape(2, KSIZE, KSIZE).astype(jnp.float32)        # (cin, kh, kw)
    j = jnp.arange(w_dim)[:, None]
    wo = jnp.arange(w_dim)[None, :]
    tap = j - wo + PAD                                             # (W, W)
    valid = (tap >= 0) & (tap < KSIZE)
    tap_c = jnp.clip(tap, 0, KSIZE - 1)
    bands = jnp.where(valid[None, None], w[:, :, tap_c], 0.0)      # (cin, kh, W, W)
    # -> (kh, cin, j, w) then flatten contraction dims: (KSIZE*2W, W)
    return jnp.transpose(bands, (1, 0, 2, 3)).reshape(KSIZE * 2 * w_dim, w_dim)


@jax.jit
def spatial_attention(x, weight):
    """x: (N, C, H, W); weight: (1, 2, KSIZE, KSIZE) OIHW, no bias. Returns (N, 1, H, W)."""
    N, C, H, W = x.shape
    bmat = _make_band_matrix(weight, W)                            # (KSIZE*2W, W)

    # Block several batch images per grid step (amortize per-step overhead for small
    # images) while keeping the double-buffered input block well inside scoped VMEM.
    img_bytes = C * H * W * 4
    budget = 2 * 1024 * 1024
    max_bt = min(8, max(1, budget // max(img_bytes, 1)))
    bt = 1
    for d in range(1, N + 1):
        if N % d == 0 and d <= max_bt:
            bt = d

    return pl.pallas_call(
        _spatial_attn_kernel,
        out_shape=jax.ShapeDtypeStruct((N, 1, H, W), x.dtype),
        grid=(N // bt,),
        in_specs=[
            pl.BlockSpec((KSIZE * 2 * W, W), lambda n: (0, 0)),     # band matrix (constant block)
            pl.BlockSpec((bt, C, H, W), lambda n: (n, 0, 0, 0)),    # bt input images
        ],
        out_specs=pl.BlockSpec((bt, 1, H, W), lambda n: (n, 0, 0, 0)),
        compiler_params=pltpu.CompilerParams(
            dimension_semantics=("parallel",),
            vmem_limit_bytes=32 * 1024 * 1024,
        ),
    )(bmat, x)


def _reference(x, weight):
    avg = jnp.mean(x, axis=1, keepdims=True)
    mx = jnp.max(x, axis=1, keepdims=True)
    cat = jnp.concatenate([avg, mx], axis=1)
    out = lax.conv_general_dilated(
        cat, weight, window_strides=(1, 1), padding=((PAD, PAD), (PAD, PAD)),
        dimension_numbers=("NCHW", "OIHW", "NCHW"),
        precision=lax.Precision.HIGHEST)
    return jax.nn.sigmoid(out)


if __name__ == "__main__":
    key = jax.random.PRNGKey(0)
    kx, kw = jax.random.split(key)

    N, C, H, W = 2, 4, 16, 16
    x = jax.random.normal(kx, (N, C, H, W), dtype=jnp.float32)
    fan_in = 2 * KSIZE * KSIZE
    weight = jax.random.normal(kw, (1, 2, KSIZE, KSIZE), dtype=jnp.float32) * (1.0 / fan_in) ** 0.5

    out = jax.block_until_ready(spatial_attention(x, weight))
    ref = _reference(x, weight)

    assert out.shape == (N, 1, H, W), out.shape
    err = float(jnp.max(jnp.abs(out - ref)))
    # f32 MXU path is typically ~1e-6 off the reference; small slack for MXU pass modes.
    assert err < 2e-3, err
    print("KERNEL_OK")
</pallas_src>

<mosaic_0001>
module attributes {stable_mosaic.version = 11 : i64} {
  func.func @_spatial_attn_kernel(%arg0: i32, %arg1: memref<288x16xf32, #tpu.memory_space<vmem>>, %arg2: memref<2x4x16x16xf32, #tpu.memory_space<vmem>>, %arg3: memref<2x1x16x16xf32, #tpu.memory_space<vmem>>) attributes {dimension_semantics = [#tpu.dimension_semantics<parallel>], iteration_bounds = array<i64: 1>, scalar_prefetch = 0 : i64, scratch_operands = 0 : i64, tpu.core_type = #tpu.core_type<tc>, window_params = [{pipeline_mode = #tpu.pipeline_mode<synchronous>, transform_indices = @transform_0, window_bounds = array<i64: 288, 16>}, {transform_indices = @transform_1, window_bounds = array<i64: 2, 4, 16, 16>}, {transform_indices = @transform_2, window_bounds = array<i64: 2, 1, 16, 16>}]} {
    %c0 = arith.constant 0 : index
    %c0_0 = arith.constant 0 : index
    %0 = vector.load %arg1[%c0, %c0_0] : memref<288x16xf32, #tpu.memory_space<vmem>>, vector<288x16xf32>
    %cst = arith.constant 0.000000e+00 : f32
    %1 = vector.broadcast %cst : f32 to vector<4x32xf32>
    %c0_1 = arith.constant 0 : index
    %c0_2 = arith.constant 0 : index
    %c0_3 = arith.constant 0 : index
    %c0_4 = arith.constant 0 : index
    %2 = vector.load %arg2[%c0_1, %c0_2, %c0_3, %c0_4] : memref<2x4x16x16xf32, #tpu.memory_space<vmem>>, vector<1x1x16x16xf32>
    %3 = vector.shape_cast %2 : vector<1x1x16x16xf32> to vector<16x16xf32>
    %c0_5 = arith.constant 0 : index
    %c1 = arith.constant 1 : index
    %c0_6 = arith.constant 0 : index
    %c0_7 = arith.constant 0 : index
    %4 = vector.load %arg2[%c0_5, %c1, %c0_6, %c0_7] : memref<2x4x16x16xf32, #tpu.memory_space<vmem>>, vector<1x1x16x16xf32>
    %5 = vector.shape_cast %4 : vector<1x1x16x16xf32> to vector<16x16xf32>
    %6 = arith.addf %3, %5 : vector<16x16xf32>
    %7 = arith.maximumf %3, %5 : vector<16x16xf32>
    %c0_8 = arith.constant 0 : index
    %c2 = arith.constant 2 : index
    %c0_9 = arith.constant 0 : index
    %c0_10 = arith.constant 0 : index
    %8 = vector.load %arg2[%c0_8, %c2, %c0_9, %c0_10] : memref<2x4x16x16xf32, #tpu.memory_space<vmem>>, vector<1x1x16x16xf32>
    %9 = vector.shape_cast %8 : vector<1x1x16x16xf32> to vector<16x16xf32>
    %10 = arith.addf %6, %9 : vector<16x16xf32>
    %11 = arith.maximumf %7, %9 : vector<16x16xf32>
    %c0_11 = arith.constant 0 : index
    %c3 = arith.constant 3 : index
    %c0_12 = arith.constant 0 : index
    %c0_13 = arith.constant 0 : index
    %12 = vector.load %arg2[%c0_11, %c3, %c0_12, %c0_13] : memref<2x4x16x16xf32, #tpu.memory_space<vmem>>, vector<1x1x16x16xf32>
    %13 = vector.shape_cast %12 : vector<1x1x16x16xf32> to vector<16x16xf32>
    %14 = arith.addf %10, %13 : vector<16x16xf32>
    %15 = arith.maximumf %11, %13 : vector<16x16xf32>
    %cst_14 = arith.constant 2.500000e-01 : f32
    %16 = vector.broadcast %cst_14 : f32 to vector<16x16xf32>
    %17 = arith.mulf %14, %16 : vector<16x16xf32>
    %18 = tpu.concatenate %17, %15 in 1 : vector<16x16xf32>, vector<16x16xf32> -> vector<16x32xf32>
    %19 = tpu.concatenate %1, %18, %1 in 0 : vector<4x32xf32>, vector<16x32xf32>, vector<4x32xf32> -> vector<24x32xf32>
    %20 = vector.extract_strided_slice %19 {offsets = [0, 0], sizes = [16, 32], strides = [1, 1]} : vector<24x32xf32> to vector<16x32xf32>
    %21 = vector.extract_strided_slice %19 {offsets = [1, 0], sizes = [16, 32], strides = [1, 1]} : vector<24x32xf32> to vector<16x32xf32>
    %22 = vector.extract_strided_slice %19 {offsets = [2, 0], sizes = [16, 32], strides = [1, 1]} : vector<24x32xf32> to vector<16x32xf32>
    %23 = vector.extract_strided_slice %19 {offsets = [3, 0], sizes = [16, 32], strides = [1, 1]} : vector<24x32xf32> to vector<16x32xf32>
    %24 = vector.extract_strided_slice %19 {offsets = [4, 0], sizes = [16, 32], strides = [1, 1]} : vector<24x32xf32> to vector<16x32xf32>
    %25 = vector.extract_strided_slice %19 {offsets = [5, 0], sizes = [16, 32], strides = [1, 1]} : vector<24x32xf32> to vector<16x32xf32>
    %26 = vector.extract_strided_slice %19 {offsets = [6, 0], sizes = [16, 32], strides = [1, 1]} : vector<24x32xf32> to vector<16x32xf32>
    %27 = vector.extract_strided_slice %19 {offsets = [7, 0], sizes = [16, 32], strides = [1, 1]} : vector<24x32xf32> to vector<16x32xf32>
    %28 = vector.extract_strided_slice %19 {offsets = [8, 0], sizes = [16, 32], strides = [1, 1]} : vector<24x32xf32> to vector<16x32xf32>
    %29 = tpu.concatenate %20, %21, %22, %23, %24, %25, %26, %27, %28 in 1 : vector<16x32xf32>, vector<16x32xf32>, vector<16x32xf32>, vector<16x32xf32>, vector<16x32xf32>, vector<16x32xf32>, vector<16x32xf32>, vector<16x32xf32>, vector<16x32xf32> -> vector<16x288xf32>
    %c1_15 = arith.constant 1 : index
    %c0_16 = arith.constant 0 : index
    %c0_17 = arith.constant 0 : index
    %c0_18 = arith.constant 0 : index
    %30 = vector.load %arg2[%c1_15, %c0_16, %c0_17, %c0_18] : memref<2x4x16x16xf32, #tpu.memory_space<vmem>>, vector<1x1x16x16xf32>
    %31 = vector.shape_cast %30 : vector<1x1x16x16xf32> to vector<16x16xf32>
    %c1_19 = arith.constant 1 : index
    %c1_20 = arith.constant 1 : index
    %c0_21 = arith.constant 0 : index
    %c0_22 = arith.constant 0 : index
    %32 = vector.load %arg2[%c1_19, %c1_20, %c0_21, %c0_22] : memref<2x4x16x16xf32, #tpu.memory_space<vmem>>, vector<1x1x16x16xf32>
    %33 = vector.shape_cast %32 : vector<1x1x16x16xf32> to vector<16x16xf32>
    %34 = arith.addf %31, %33 : vector<16x16xf32>
    %35 = arith.maximumf %31, %33 : vector<16x16xf32>
    %c1_23 = arith.constant 1 : index
    %c2_24 = arith.constant 2 : index
    %c0_25 = arith.constant 0 : index
    %c0_26 = arith.constant 0 : index
    %36 = vector.load %arg2[%c1_23, %c2_24, %c0_25, %c0_26] : memref<2x4x16x16xf32, #tpu.memory_space<vmem>>, vector<1x1x16x16xf32>
    %37 = vector.shape_cast %36 : vector<1x1x16x16xf32> to vector<16x16xf32>
    %38 = arith.addf %34, %37 : vector<16x16xf32>
    %39 = arith.maximumf %35, %37 : vector<16x16xf32>
    %c1_27 = arith.constant 1 : index
    %c3_28 = arith.constant 3 : index
    %c0_29 = arith.constant 0 : index
    %c0_30 = arith.constant 0 : index
    %40 = vector.load %arg2[%c1_27, %c3_28, %c0_29, %c0_30] : memref<2x4x16x16xf32, #tpu.memory_space<vmem>>, vector<1x1x16x16xf32>
    %41 = vector.shape_cast %40 : vector<1x1x16x16xf32> to vector<16x16xf32>
    %42 = arith.addf %38, %41 : vector<16x16xf32>
    %43 = arith.maximumf %39, %41 : vector<16x16xf32>
    %cst_31 = arith.constant 2.500000e-01 : f32
    %44 = vector.broadcast %cst_31 : f32 to vector<16x16xf32>
    %45 = arith.mulf %42, %44 : vector<16x16xf32>
    %46 = tpu.concatenate %45, %43 in 1 : vector<16x16xf32>, vector<16x16xf32> -> vector<16x32xf32>
    %47 = tpu.concatenate %1, %46, %1 in 0 : vector<4x32xf32>, vector<16x32xf32>, vector<4x32xf32> -> vector<24x32xf32>
    %48 = vector.extract_strided_slice %47 {offsets = [0, 0], sizes = [16, 32], strides = [1, 1]} : vector<24x32xf32> to vector<16x32xf32>
    %49 = vector.extract_strided_slice %47 {offsets = [1, 0], sizes = [16, 32], strides = [1, 1]} : vector<24x32xf32> to vector<16x32xf32>
    %50 = vector.extract_strided_slice %47 {offsets = [2, 0], sizes = [16, 32], strides = [1, 1]} : vector<24x32xf32> to vector<16x32xf32>
    %51 = vector.extract_strided_slice %47 {offsets = [3, 0], sizes = [16, 32], strides = [1, 1]} : vector<24x32xf32> to vector<16x32xf32>
    %52 = vector.extract_strided_slice %47 {offsets = [4, 0], sizes = [16, 32], strides = [1, 1]} : vector<24x32xf32> to vector<16x32xf32>
    %53 = vector.extract_strided_slice %47 {offsets = [5, 0], sizes = [16, 32], strides = [1, 1]} : vector<24x32xf32> to vector<16x32xf32>
    %54 = vector.extract_strided_slice %47 {offsets = [6, 0], sizes = [16, 32], strides = [1, 1]} : vector<24x32xf32> to vector<16x32xf32>
    %55 = vector.extract_strided_slice %47 {offsets = [7, 0], sizes = [16, 32], strides = [1, 1]} : vector<24x32xf32> to vector<16x32xf32>
    %56 = vector.extract_strided_slice %47 {offsets = [8, 0], sizes = [16, 32], strides = [1, 1]} : vector<24x32xf32> to vector<16x32xf32>
    %57 = tpu.concatenate %48, %49, %50, %51, %52, %53, %54, %55, %56 in 1 : vector<16x32xf32>, vector<16x32xf32>, vector<16x32xf32>, vector<16x32xf32>, vector<16x32xf32>, vector<16x32xf32>, vector<16x32xf32>, vector<16x32xf32>, vector<16x32xf32> -> vector<16x288xf32>
    %58 = tpu.concatenate %29, %57 in 0 : vector<16x288xf32>, vector<16x288xf32> -> vector<32x288xf32>
    %cst_32 = arith.constant dense<0.000000e+00> : vector<32x16xf32>
    %59 = tpu.matmul %58, %0, %cst_32 {dimension_numbers = #tpu.dot_dimension_numbers<[1], [0], [0], [1], [0, 0, 1, 1], [], []>} : vector<32x288xf32>, vector<288x16xf32>, vector<32x16xf32> -> vector<32x16xf32>
    %60 = arith.negf %59 : vector<32x16xf32>
    %61 = math.exp %60 : vector<32x16xf32>
    %cst_33 = arith.constant 1.000000e+00 : f32
    %62 = vector.broadcast %cst_33 : f32 to vector<32x16xf32>
    %63 = arith.addf %62, %61 : vector<32x16xf32>
    %64 = arith.divf %62, %63 : vector<32x16xf32>
    %65 = vector.extract_strided_slice %64 {offsets = [0, 0], sizes = [16, 16], strides = [1, 1]} : vector<32x16xf32> to vector<16x16xf32>
    %c0_34 = arith.constant 0 : index
    %c0_35 = arith.constant 0 : index
    %c0_36 = arith.constant 0 : index
    %c0_37 = arith.constant 0 : index
    %66 = vector.load %arg3[%c0_34, %c0_35, %c0_36, %c0_37] : memref<2x1x16x16xf32, #tpu.memory_space<vmem>>, vector<1x1x16x16xf32>
    %67 = vector.shape_cast %66 : vector<1x1x16x16xf32> to vector<16x16xf32>
    %68 = vector.shape_cast %65 : vector<16x16xf32> to vector<1x1x16x16xf32>
    tpu.vector_store %arg3[%c0_34, %c0_35, %c0_36, %c0_37], %68 {strides = array<i32>} : memref<2x1x16x16xf32, #tpu.memory_space<vmem>>, vector<1x1x16x16xf32>,
    %69 = vector.extract_strided_slice %64 {offsets = [16, 0], sizes = [16, 16], strides = [1, 1]} : vector<32x16xf32> to vector<16x16xf32>
    %c1_38 = arith.constant 1 : index
    %c0_39 = arith.constant 0 : index
    %c0_40 = arith.constant 0 : index
    %c0_41 = arith.constant 0 : index
    %70 = vector.load %arg3[%c1_38, %c0_39, %c0_40, %c0_41] : memref<2x1x16x16xf32, #tpu.memory_space<vmem>>, vector<1x1x16x16xf32>
    %71 = vector.shape_cast %70 : vector<1x1x16x16xf32> to vector<16x16xf32>
    %72 = vector.shape_cast %69 : vector<16x16xf32> to vector<1x1x16x16xf32>
    tpu.vector_store %arg3[%c1_38, %c0_39, %c0_40, %c0_41], %72 {strides = array<i32>} : memref<2x1x16x16xf32, #tpu.memory_space<vmem>>, vector<1x1x16x16xf32>,
    return
  }
  func.func @transform_0(%arg0: i32) -> (i32, i32) {
    %c0_i32 = arith.constant 0 : i32
    %c0_i32_0 = arith.constant 0 : i32
    %c0_i32_1 = arith.constant 0 : i32
    return %c0_i32, %c0_i32_0 : i32, i32
  }
  func.func @transform_1(%arg0: i32) -> (i32, i32, i32, i32) {
    %c0_i32 = arith.constant 0 : i32
    %c0_i32_0 = arith.constant 0 : i32
    %c0_i32_1 = arith.constant 0 : i32
    %c0_i32_2 = arith.constant 0 : i32
    return %arg0, %c0_i32, %c0_i32_0, %c0_i32_1 : i32, i32, i32, i32
  }
  func.func @transform_2(%arg0: i32) -> (i32, i32, i32, i32) {
    %c0_i32 = arith.constant 0 : i32
    %c0_i32_0 = arith.constant 0 : i32
    %c0_i32_1 = arith.constant 0 : i32
    %c0_i32_2 = arith.constant 0 : i32
    return %arg0, %c0_i32, %c0_i32_0, %c0_i32_1 : i32, i32, i32, i32
  }
}

</mosaic_0001>

<llo_original>
// kernel: spatial_attention.1
$region0: #{spatial_attention.1}
  #allocation0 [shape = 'u32[]', space=smem, size = 0x4, offset = 0x4, fixed_abs, tag = 'smem constant byte address 0x4 - core index']
  #allocation1 [shape = 'u32[144,128]{1,0:T(1,128)}', space=vmem, size = 0x12000, scoped, tag = 'internal scratch']
  %s0 = inlined_call_operand.vmem [shape: f32[288,16], index: 0, kind: input, shape index: {}]
  %s1 = inlined_call_operand.vmem [shape: f32[2,4,16,16], index: 1, kind: input, shape index: {}]
  %s2 = inlined_call_operand.hbm [shape: f32[2,1,16,16], index: 2, kind: output, shape index: {}]
  %s3 = sld [smem:[#allocation0]]
  $region18: #{spatial_attention.1} parent=0
    _
  %s5 = ssub.s32 1, %s3
  %s6 = scalar_select 0, %s5, %s3
  $region1: #{spatial_attention.1} parent=0
    #allocation2 [shape = 'u8[16384]{0}', space=vmem, size = 0x4000, scoped, tag = 'output window, operand 0, single buffered']
    #allocation3 [shape = 's32[1]{0}', space=sflag, size = 0x4, scoped, tag = 'scoped memory for spatial_attention.1']
    %7 = vsyncpa [#allocation3], 0
    // Predicated region
    $region2: #{spatial_attention.1} parent=1 // pred_check
      _
    $region3: #{spatial_attention.1} parent=1 // pred_check_branch
      %9 = sbr.rel (0) target = $region5
    $region4: #{spatial_attention.1} parent=1 // pred_region
      _
    $region5: #{spatial_attention.1} parent=1 // pred_fallthru
      _
    // Predicated region
    $region6: #{spatial_attention.1} parent=1 // pred_check
      _
    $region7: #{spatial_attention.1} parent=1 // pred_check_branch
      %11 = sbr.rel (0) target = $region9
    $region8: #{spatial_attention.1} parent=1 // pred_region
      _
    $region9: #{spatial_attention.1} parent=1 // pred_fallthru
      _
    %v12 = vld [vmem:[%s0] sm:$0xff]
    %v13 = vld [vmem:[%s0 + $0x8] sm:$0xff]
    %v14 = vld [vmem:[%s0 + $0x10] sm:$0xff]
    %v15 = vld [vmem:[%s0 + $0x18] sm:$0xff]
    %v16 = vld [vmem:[%s0 + $0x20] sm:$0xff]
    %v17 = vld [vmem:[%s0 + $0x28] sm:$0xff]
    %v18 = vld [vmem:[%s0 + $0x30] sm:$0xff]
    %v19 = vld [vmem:[%s0 + $0x38] sm:$0xff]
    %v20 = vld [vmem:[%s0 + $0x40] sm:$0xff]
    %v21 = vld [vmem:[%s0 + $0x48] sm:$0xff]
    %v22 = vld [vmem:[%s0 + $0x50] sm:$0xff]
    %v23 = vld [vmem:[%s0 + $0x58] sm:$0xff]
    %v24 = vld [vmem:[%s0 + $0x60] sm:$0xff]
    %v25 = vld [vmem:[%s0 + $0x68] sm:$0xff]
    %v26 = vld [vmem:[%s0 + $0x70] sm:$0xff]
    %v27 = vld [vmem:[%s0 + $0x78] sm:$0xff]
    %v28 = vld [vmem:[%s0 + $0x80] sm:$0xff]
    %v29 = vld [vmem:[%s0 + $0x88] sm:$0xff]
    %v30 = vld [vmem:[%s0 + $0x90] sm:$0xff]
    %v31 = vld [vmem:[%s0 + $0x98] sm:$0xff]
    %v32 = vld [vmem:[%s0 + $0xa0] sm:$0xff]
    %v33 = vld [vmem:[%s0 + $0xa8] sm:$0xff]
    %v34 = vld [vmem:[%s0 + $0xb0] sm:$0xff]
    %v35 = vld [vmem:[%s0 + $0xb8] sm:$0xff]
    %v36 = vld [vmem:[%s0 + $0xc0] sm:$0xff]
    %v37 = vld [vmem:[%s0 + $0xc8] sm:$0xff]
    %v38 = vld [vmem:[%s0 + $0xd0] sm:$0xff]
    %v39 = vld [vmem:[%s0 + $0xd8] sm:$0xff]
    %v40 = vld [vmem:[%s0 + $0xe0] sm:$0xff]
    %v41 = vld [vmem:[%s0 + $0xe8] sm:$0xff]
    %v42 = vld [vmem:[%s0 + $0xf0] sm:$0xff]
    %v43 = vld [vmem:[%s0 + $0xf8] sm:$0xff]
    %v44 = vld [vmem:[%s0 + $0x100] sm:$0xff]
    %v45 = vld [vmem:[%s0 + $0x108] sm:$0xff]
    %v46 = vld [vmem:[%s0 + $0x110] sm:$0xff]
    %v47 = vld [vmem:[%s0 + $0x118] sm:$0xff]
    %v48 = vld [vmem:[%s1] sm:$0xff]
    %v49 = vld [vmem:[%s1 + $0x8] sm:$0xff]
    %s50 = scalar_lea.vmem %s1, 16
    %v51 = vld [vmem:[%s50] sm:$0xff]
    %v52 = vld [vmem:[%s50 + $0x8] sm:$0xff]
    %v53 = vadd.f32 %v48, %v51
    %v54 = vadd.f32 %v49, %v52
    %v55 = vmax.f32 %v48, %v51
    %v56 = vmax.f32 %v49, %v52
    %s57 = scalar_lea.vmem %s1, 32
    %v58 = vld [vmem:[%s57] sm:$0xff]
    %v59 = vld [vmem:[%s57 + $0x8] sm:$0xff]
    %v60 = vadd.f32 %v53, %v58
    %v61 = vadd.f32 %v54, %v59
    %v62 = vmax.f32 %v55, %v58
    %v63 = vmax.f32 %v56, %v59
    %s64 = scalar_lea.vmem %s1, 48
    %v65 = vld [vmem:[%s64] sm:$0xff]
    %v66 = vld [vmem:[%s64 + $0x8] sm:$0xff]
    %v67 = vadd.f32 %v60, %v65
    %v68 = vadd.f32 %v61, %v66
    %v69 = vmax.f32 %v62, %v65
    %v70 = vmax.f32 %v63, %v66
    %v71 = vmul.f32 %v67, 0.25
    %v72 = vmul.f32 %v68, 0.25
    %75 = vrot.lane.b32.xlu0 %v69, 16
    %v76 = vpop.permute.xlu0 %75
    %77 = vrot.lane.b32.xlu0 %v70, 16
    %v78 = vpop.permute.xlu0 %77
    %vm81 = vcmask 130048
    %v82 = vsel %vm81, %v71, %v76
    %v83 = vsel %vm81, %v72, %v78
    %vm86 = vcmask 1043456
    %v87 = vrot.slane %v82, 4
    %v88 = vrot.slane %v83, 4
    %v89 = vsel %vm86, %v87, %v88
    %v93 = vsel %vm86, 0.0, %v87
    %v94 = vsel %vm86, %v88, 0.0
    %vm97 = vcmask 1046528
    %v98 = vrot.slane %v93, 1
    %v99 = vrot.slane %v89, 1
    %v100 = vsel %vm97, %v98, %v99
    %v101 = vrot.slane %v94, 1
    %v102 = vsel %vm97, %v99, %v101
    %103 = vrot.lane.b32.xlu0 %v100, 32
    %v104 = vpop.permute.xlu0 %103
    %105 = vrot.lane.b32.xlu0 %v102, 32
    %v106 = vpop.permute.xlu0 %105
    %vm109 = vcmask 1045504
    %v110 = vrot.slane %v93, 2
    %v111 = vrot.slane %v89, 2
    %v112 = vsel %vm109, %v110, %v111
    %v113 = vrot.slane %v94, 2
    %v114 = vsel %vm109, %v111, %v113
    %115 = vrot.lane.b32.xlu0 %v112, 64
    %v116 = vpop.permute.xlu0 %115
    %117 = vrot.lane.b32.xlu0 %v114, 64
    %v118 = vpop.permute.xlu0 %117
    %vm121 = vcmask 1044480
    %v122 = vrot.slane %v93, 3
    %v123 = vrot.slane %v89, 3
    %v124 = vsel %vm121, %v122, %v123
    %v125 = vrot.slane %v94, 3
    %v126 = vsel %vm121, %v123, %v125
    %127 = vrot.lane.b32.xlu0 %v124, 96
    %v128 = vpop.permute.xlu0 %127
    %129 = vrot.lane.b32.xlu0 %v126, 96
    %v130 = vpop.permute.xlu0 %129
    %v133 = vrot.slane %v93, 4
    %v134 = vrot.slane %v89, 4
    %v135 = vsel %vm86, %v133, %v134
    %v136 = vrot.slane %v94, 4
    %v137 = vsel %vm86, %v134, %v136
    %vm140 = vcmask 1042432
    %v141 = vrot.slane %v93, 5
    %v142 = vrot.slane %v89, 5
    %v143 = vsel %vm140, %v141, %v142
    %v144 = vrot.slane %v94, 5
    %v145 = vsel %vm140, %v142, %v144
    %146 = vrot.lane.b32.xlu0 %v143, 32
    %v147 = vpop.permute.xlu0 %146
    %148 = vrot.lane.b32.xlu0 %v145, 32
    %v149 = vpop.permute.xlu0 %148
    %vm152 = vcmask 1041408
    %v153 = vrot.slane %v93, 6
    %v154 = vrot.slane %v89, 6
    %v155 = vsel %vm152, %v153, %v154
    %v156 = vrot.slane %v94, 6
    %v157 = vsel %vm152, %v154, %v156
    %158 = vrot.lane.b32.xlu0 %v155, 64
    %v159 = vpop.permute.xlu0 %158
    %160 = vrot.lane.b32.xlu0 %v157, 64
    %v161 = vpop.permute.xlu0 %160
    %vm164 = vcmask 1040384
    %v165 = vrot.slane %v93, 7
    %v166 = vrot.slane %v89, 7
    %v167 = vsel %vm164, %v165, %v166
    %v168 = vrot.slane %v94, 7
    %v169 = vsel %vm164, %v166, %v168
    %170 = vrot.lane.b32.xlu0 %v167, 96
    %v171 = vpop.permute.xlu0 %170
    %172 = vrot.lane.b32.xlu0 %v169, 96
    %v173 = vpop.permute.xlu0 %172
    %vm176 = vcmask 261120
    %v177 = vsel %vm176, %v93, %v104
    %v178 = vsel %vm176, %v89, %v106
    %vm179 = vcmask 523264
    %v180 = vsel %vm179, %v177, %v116
    %v181 = vsel %vm179, %v178, %v118
    %vm182 = vcmask 785408
    %v183 = vsel %vm182, %v180, %v128
    %v184 = vsel %vm182, %v181, %v130
    %v185 = vsel %vm176, %v135, %v147
    %v186 = vsel %vm176, %v137, %v149
    %v187 = vsel %vm179, %v185, %v159
    %v188 = vsel %vm179, %v186, %v161
    %v189 = vsel %vm182, %v187, %v171
    %v190 = vsel %vm182, %v188, %v173
    %s191 = scalar_lea.vmem %s1, 64
    %v192 = vld [vmem:[%s191] sm:$0xff]
    %v193 = vld [vmem:[%s191 + $0x8] sm:$0xff]
    %s194 = scalar_lea.vmem %s1, 80
    %v195 = vld [vmem:[%s194] sm:$0xff]
    %v196 = vld [vmem:[%s194 + $0x8] sm:$0xff]
    %v197 = vadd.f32 %v192, %v195
    %v198 = vadd.f32 %v193, %v196
    %v199 = vmax.f32 %v192, %v195
    %v200 = vmax.f32 %v193, %v196
    %s201 = scalar_lea.vmem %s1, 96
    %v202 = vld [vmem:[%s201] sm:$0xff]
    %v203 = vld [vmem:[%s201 + $0x8] sm:$0xff]
    %v204 = vadd.f32 %v197, %v202
    %v205 = vadd.f32 %v198, %v203
    %v206 = vmax.f32 %v199, %v202
    %v207 = vmax.f32 %v200, %v203
    %s208 = scalar_lea.vmem %s1, 112
    %v209 = vld [vmem:[%s208] sm:$0xff]
    %v210 = vld [vmem:[%s208 + $0x8] sm:$0xff]
    %v211 = vadd.f32 %v204, %v209
    %v212 = vadd.f32 %v205, %v210
    %v213 = vmax.f32 %v206, %v209
    %v214 = vmax.f32 %v207, %v210
    %v215 = vmul.f32 %v211, 0.25
    %v216 = vmul.f32 %v212, 0.25
    %219 = vrot.lane.b32.xlu0 %v213, 16
    %v220 = vpop.permute.xlu0 %219
    %221 = vrot.lane.b32.xlu0 %v214, 16
    %v222 = vpop.permute.xlu0 %221
    %v225 = vsel %vm81, %v215, %v220
    %v226 = vsel %vm81, %v216, %v222
    %v229 = vrot.slane %v225, 4
    %v230 = vrot.slane %v226, 4
    %v231 = vsel %vm86, %v229, %v230
    %v235 = vsel %vm86, 0.0, %v229
    %v236 = vsel %vm86, %v230, 0.0
    %v239 = vrot.slane %v235, 1
    %v240 = vrot.slane %v231, 1
    %v241 = vsel %vm97, %v239, %v240
    %v242 = vrot.slane %v236, 1
    %v243 = vsel %vm97, %v240, %v242
    %244 = vrot.lane.b32.xlu0 %v241, 32
    %v245 = vpop.permute.xlu0 %244
    %246 = vrot.lane.b32.xlu0 %v243, 32
    %v247 = vpop.permute.xlu0 %246
    %v250 = vrot.slane %v235, 2
    %v251 = vrot.slane %v231, 2
    %v252 = vsel %vm109, %v250, %v251
    %v253 = vrot.slane %v236, 2
    %v254 = vsel %vm109, %v251, %v253
    %255 = vrot.lane.b32.xlu0 %v252, 64
    %v256 = vpop.permute.xlu0 %255
    %257 = vrot.lane.b32.xlu0 %v254, 64
    %v258 = vpop.permute.xlu0 %257
    %v261 = vrot.slane %v235, 3
    %v262 = vrot.slane %v231, 3
    %v263 = vsel %vm121, %v261, %v262
    %v264 = vrot.slane %v236, 3
    %v265 = vsel %vm121, %v262, %v264
    %266 = vrot.lane.b32.xlu0 %v263, 96
    %v267 = vpop.permute.xlu0 %266
    %268 = vrot.lane.b32.xlu0 %v265, 96
    %v269 = vpop.permute.xlu0 %268
    %v272 = vrot.slane %v235, 4
    %v273 = vrot.slane %v231, 4
    %v274 = vsel %vm86, %v272, %v273
    %v275 = vrot.slane %v236, 4
    %v276 = vsel %vm86, %v273, %v275
    %v279 = vrot.slane %v235, 5
    %v280 = vrot.slane %v231, 5
    %v281 = vsel %vm140, %v279, %v280
    %v282 = vrot.slane %v236, 5
    %v283 = vsel %vm140, %v280, %v282
    %284 = vrot.lane.b32.xlu0 %v281, 32
    %v285 = vpop.permute.xlu0 %284
    %286 = vrot.lane.b32.xlu0 %v283, 32
    %v287 = vpop.permute.xlu0 %286
    %v290 = vrot.slane %v235, 6
    %v291 = vrot.slane %v231, 6
    %v292 = vsel %vm152, %v290, %v291
    %v293 = vrot.slane %v236, 6
    %v294 = vsel %vm152, %v291, %v293
    %295 = vrot.lane.b32.xlu0 %v292, 64
    %v296 = vpop.permute.xlu0 %295
    %297 = vrot.lane.b32.xlu0 %v294, 64
    %v298 = vpop.permute.xlu0 %297
    %v301 = vrot.slane %v235, 7
    %v302 = vrot.slane %v231, 7
    %v303 = vsel %vm164, %v301, %v302
    %v304 = vrot.slane %v236, 7
    %v305 = vsel %vm164, %v302, %v304
    %306 = vrot.lane.b32.xlu0 %v303, 96
    %v307 = vpop.permute.xlu0 %306
    %308 = vrot.lane.b32.xlu0 %v305, 96
    %v309 = vpop.permute.xlu0 %308
    %v312 = vsel %vm176, %v235, %v245
    %v313 = vsel %vm176, %v231, %v247
    %v314 = vsel %vm179, %v312, %v256
    %v315 = vsel %vm179, %v313, %v258
    %v316 = vsel %vm182, %v314, %v267
    %v317 = vsel %vm182, %v315, %v269
    %v318 = vsel %vm176, %v274, %v285
    %v319 = vsel %vm176, %v276, %v287
    %v320 = vsel %vm179, %v318, %v296
    %v321 = vsel %vm179, %v319, %v298
    %v322 = vsel %vm182, %v320, %v307
    %v323 = vsel %vm182, %v321, %v309
    %v324 = vsel %vm176, %v89, 0
    %v326 = vsel %vm176, %v94, 0
    %v328 = vsel %vm176, %v231, 0
    %v330 = vsel %vm176, %v236, 0
    %332 = vmatprep.subr.mxu0 0.0
    %333 = vmatpush1.msra.mxu0 %v12
    %334 = vmatprep.subr.mxu0 0.0
    %335 = vmatpush1.msra.mxu0 %v13
    %336 = vmatprep.subr.mxu0 0.0
    %337 = vmatpush1.msra.mxu0 %v14
    %338 = vmatprep.subr.mxu0 0.0
    %339 = vmatpush1.msra.mxu0 %v15
    %340 = vmatprep.subr.mxu0 0.0
    %341 = vmatpush1.msra.mxu0 %v16
    %342 = vmatprep.subr.mxu0 0.0
    %343 = vmatpush1.msra.mxu0 %v17
    %344 = vmatprep.subr.mxu0 0.0
    %345 = vmatpush1.msra.mxu0 %v18
    %346 = vmatprep.subr.mxu0 0.0
    %347 = vmatpush1.msra.mxu0 %v19
    %348 = vmatprep.subr.mxu0 0.0
    %349 = vmatpush1.msra.mxu0 %v20
    %350 = vmatprep.subr.mxu0 0.0
    %351 = vmatpush1.msra.mxu0 %v21
    %352 = vmatprep.subr.mxu0 0.0
    %353 = vmatpush1.msra.mxu0 %v22
    %354 = vmatprep.subr.mxu0 0.0
    %355 = vmatpush1.msra.mxu0 %v23
    %356 = vmatprep.subr.mxu0 0.0
    %357 = vmatpush1.msra.mxu0 %v24
    %358 = vmatprep.subr.mxu0 0.0
    %359 = vmatpush1.msra.mxu0 %v25
    %360 = vmatprep.subr.mxu0 0.0
    %361 = vmatpush1.msra.mxu0 %v26
    %362 = vmatprep.subr.mxu0 0.0
    %363 = vmatpush1.msra.mxu0 %v27
    %364 = vmatprep.subr.mxu0 0.0
    %365 = vmatpush1.msra.mxu0 %v28
    %366 = vmatprep.subr.mxu0 0.0
    %367 = vmatpush1.msra.mxu0 %v29
    %368 = vmatprep.subr.mxu0 0.0
    %369 = vmatpush1.msra.mxu0 %v30
    %370 = vmatprep.subr.mxu0 0.0
    %371 = vmatpush1.msra.mxu0 %v31
    %372 = vmatprep.subr.mxu0 0.0
    %373 = vmatpush1.msra.mxu0 %v32
    %374 = vmatprep.subr.mxu0 0.0
    %375 = vmatpush1.msra.mxu0 %v33
    %376 = vmatprep.subr.mxu0 0.0
    %377 = vmatpush1.msra.mxu0 %v34
    %378 = vmatprep.subr.mxu0 0.0
    %379 = vmatpush1.msra.mxu0 %v35
    %380 = vmatprep.subr.mxu0 0.0
    %381 = vmatpush1.msra.mxu0 %v36
    %382 = vmatprep.subr.mxu0 0.0
    %383 = vmatpush1.msra.mxu0 %v37
    %384 = vmatprep.subr.mxu0 0.0
    %385 = vmatpush1.msra.mxu0 %v38
    %386 = vmatprep.subr.mxu0 0.0
    %387 = vmatpush1.msra.mxu0 %v39
    %388 = vmatprep.subr.mxu0 0.0
    %389 = vmatpush1.msra.mxu0 %v40
    %390 = vmatprep.subr.mxu0 0.0
    %391 = vmatpush1.msra.mxu0 %v41
    %392 = vmatprep.subr.mxu0 0.0
    %393 = vmatpush1.msra.mxu0 %v42
    %394 = vmatprep.subr.mxu0 0.0
    %395 = vmatpush1.msra.mxu0 %v43
    %396 = vmatprep.mubr.f32.mxu0 %v189
    %397 = vmatmul.mubr.f32.gmra.mrb[0].mxu0 %v183
    %v398 = vpop.f32.mrb[0].mxu0
    %v399 = vadd.f32 0.0, %v398
    %v400 = vpop.f32.mrb[0].mxu0
    %401 = vmatprep.mubr.f32.mxu0 %v190
    %402 = vmatmul.mubr.f32.gmra.mrb[0].mxu0 %v184
    %v403 = vpop.f32.mrb[0].mxu0
    %v404 = vadd.f32 0.0, %v403
    %v405 = vpop.f32.mrb[0].mxu0
    %406 = vmatprep.mubr.f32.mxu0 %v322
    %407 = vmatmul.mubr.f32.gmra.mrb[0].mxu0 %v316
    %v408 = vpop.f32.mrb[0].mxu0
    %v409 = vadd.f32 0.0, %v408
    %v410 = vpop.f32.mrb[0].mxu0
    %411 = vmatprep.mubr.f32.mxu0 %v323
    %412 = vmatmul.mubr.f32.gmra.mrb[0].mxu0 %v317
    %v413 = vpop.f32.mrb[0].mxu0
    %v414 = vadd.f32 0.0, %v413
    %v415 = vpop.f32.mrb[0].mxu0
    %416 = vdwg.mxu0
    %417 = vmatprep.subr.mxu0 0.0
    %418 = vmatpush1.msra.mxu0 %v44
    %419 = vmatprep.subr.mxu0 0.0
    %420 = vmatpush1.msra.mxu0 %v45
    %421 = vmatprep.subr.mxu0 0.0
    %422 = vmatpush1.msra.mxu0 %v46
    %423 = vmatprep.subr.mxu0 0.0
    %424 = vmatpush1.msra.mxu0 %v47
    %425 = vmatprep.subr.mxu0 0.0
    %426 = vmatpush1.msra.mxu0 0.0
    %427 = vmatprep.subr.mxu0 0.0
    %428 = vmatpush1.msra.mxu0 0.0
    %429 = vmatprep.subr.mxu0 0.0
    %430 = vmatpush1.msra.mxu0 0.0
    %431 = vmatprep.subr.mxu0 0.0
    %432 = vmatpush1.msra.mxu0 0.0
    %433 = vmatprep.subr.mxu0 0.0
    %434 = vmatpush1.msra.mxu0 0.0
    %435 = vmatprep.subr.mxu0 0.0
    %436 = vmatpush1.msra.mxu0 0.0
    %437 = vmatprep.subr.mxu0 0.0
    %438 = vmatpush1.msra.mxu0 0.0
    %439 = vmatprep.subr.mxu0 0.0
    %440 = vmatpush1.msra.mxu0 0.0
    %441 = vmatprep.subr.mxu0 0.0
    %442 = vmatpush1.msra.mxu0 0.0
    %443 = vmatprep.subr.mxu0 0.0
    %444 = vmatpush1.msra.mxu0 0.0
    %445 = vmatprep.subr.mxu0 0.0
    %446 = vmatpush1.msra.mxu0 0.0
    %447 = vmatprep.subr.mxu0 0.0
    %448 = vmatpush1.msra.mxu0 0.0
    %449 = vmatprep.subr.mxu0 0.0
    %450 = vmatpush1.msra.mxu0 0.0
    %451 = vmatprep.subr.mxu0 0.0
    %452 = vmatpush1.msra.mxu0 0.0
    %453 = vmatprep.subr.mxu0 0.0
    %454 = vmatpush1.msra.mxu0 0.0
    %455 = vmatprep.subr.mxu0 0.0
    %456 = vmatpush1.msra.mxu0 0.0
    %457 = vmatprep.subr.mxu0 0.0
    %458 = vmatpush1.msra.mxu0 0.0
    %459 = vmatprep.subr.mxu0 0.0
    %460 = vmatpush1.msra.mxu0 0.0
    %461 = vmatprep.subr.mxu0 0.0
    %462 = vmatpush1.msra.mxu0 0.0
    %463 = vmatprep.subr.mxu0 0.0
    %464 = vmatpush1.msra.mxu0 0.0
    %465 = vmatprep.subr.mxu0 0.0
    %466 = vmatpush1.msra.mxu0 0.0
    %467 = vmatprep.subr.mxu0 0.0
    %468 = vmatpush1.msra.mxu0 0.0
    %469 = vmatprep.subr.mxu0 0.0
    %470 = vmatpush1.msra.mxu0 0.0
    %471 = vmatprep.subr.mxu0 0.0
    %472 = vmatpush1.msra.mxu0 0.0
    %473 = vmatprep.subr.mxu0 0.0
    %474 = vmatpush1.msra.mxu0 0.0
    %475 = vmatprep.subr.mxu0 0.0
    %476 = vmatpush1.msra.mxu0 0.0
    %477 = vmatprep.subr.mxu0 0.0
    %478 = vmatpush1.msra.mxu0 0.0
    %479 = vmatprep.subr.mxu0 0.0
    %480 = vmatpush1.msra.mxu0 0.0
    %481 = vmatprep.mubr.f32.mxu0 0.0
    %482 = vmatmul.mubr.f32.gmra.mrb[0].mxu0 %v324
    %v483 = vpop.f32.mrb[0].mxu0
    %v484 = vadd.f32 %v399, %v483
    %v485 = vpop.f32.mrb[0].mxu0
    %486 = vmatprep.mubr.f32.mxu0 0.0
    %487 = vmatmul.mubr.f32.gmra.mrb[0].mxu0 %v326
    %v488 = vpop.f32.mrb[0].mxu0
    %v489 = vadd.f32 %v404, %v488
    %v490 = vpop.f32.mrb[0].mxu0
    %491 = vmatprep.mubr.f32.mxu0 0.0
    %492 = vmatmul.mubr.f32.gmra.mrb[0].mxu0 %v328
    %v493 = vpop.f32.mrb[0].mxu0
    %v494 = vadd.f32 %v409, %v493
    %v495 = vpop.f32.mrb[0].mxu0
    %496 = vmatprep.mubr.f32.mxu0 0.0
    %497 = vmatmul.mubr.f32.gmra.mrb[0].mxu0 %v330
    %v498 = vpop.f32.mrb[0].mxu0
    %v499 = vadd.f32 %v414, %v498
    %v500 = vpop.f32.mrb[0].mxu0
    %501 = vdwg.mxu0
    %v502 = vxor.u32 %v484, 2147483648
    %v503 = vxor.u32 %v489, 2147483648
    %v504 = vxor.u32 %v494, 2147483648
    %v505 = vxor.u32 %v499, 2147483648
    %v506 = vmul.f32 %v502, 1.442695
    %v507 = vpow.pop %v506
    %v508 = vmul.f32 %v503, 1.442695
    %v509 = vpow.pop %v508
    %v510 = vmul.f32 %v504, 1.442695
    %v511 = vpow.pop %v510
    %v512 = vmul.f32 %v505, 1.442695
    %v513 = vpow.pop %v512
    %v514 = vadd.f32 %v507, 1.0
    %v515 = vadd.f32 %v509, 1.0
    %v516 = vadd.f32 %v511, 1.0
    %v517 = vadd.f32 %v513, 1.0
    %v518 = vrcp.pop %v514
    %v519 = vmul.f32 1.0, %v518
    %v520 = vrcp.pop %v515
    %v521 = vmul.f32 1.0, %v520
    %v522 = vrcp.pop %v516
    %v523 = vmul.f32 1.0, %v522
    %v524 = vrcp.pop %v517
    %v525 = vmul.f32 1.0, %v524
    %526 = vst.msk [vmem:[#allocation2] sm:$0xff] %vm81, %v519
    %527 = vst.msk [vmem:[#allocation2 + $0x8] sm:$0xff] %vm81, %v521
    %s528 = scalar_lea.vmem [#allocation2], 16
    %529 = vst.msk [vmem:[%s528] sm:$0xff] %vm81, %v523
    %530 = vst.msk [vmem:[%s528 + $0x8] sm:$0xff] %vm81, %v525
    // Predicated region
    $region10: #{spatial_attention.1} parent=1 // pred_check
      _
    $region11: #{spatial_attention.1} parent=1 // pred_check_branch
      %532 = sbr.rel (0) target = $region13
    $region12: #{spatial_attention.1} parent=1 // pred_region
      %s534 = ssub.s32 512, 512
      %535 = vsyncadd [#allocation3], %s534
      %s536 = sshll.u32 [#allocation2], 4
      %s537 = int_to_ptr.vmem [resolvable:$true] %s536
      %542 = dma.vmem_to_hbm [thread:$0]  %s537, 512, %s2, [#allocation3], 128, 128, 8
    $region13: #{spatial_attention.1} parent=1 // pred_fallthru
      _
    // Predicated region
    $region14: #{spatial_attention.1} parent=1 // pred_check
      _
    $region15: #{spatial_attention.1} parent=1 // pred_check_branch
      %544 = sbr.rel (0) target = $region17
    $region16: #{spatial_attention.1} parent=1 // pred_region
      %545 = dma.done [#allocation3], 512
    $region17: #{spatial_attention.1} parent=1 // pred_fallthru
      _
    %546 = vsyncpa [#allocation3], 1

</llo_original>
